<compile_context>
chip_gen: v7x
topology: tpu7x:2x2x1
jax: 0.10.0
libtpu: 0.0.40
codegen_flags: <defaults>
</compile_context>

<pallas_src>
import jax
import jax.numpy as jnp
from jax.experimental import pallas as pl
from jax.experimental.pallas import tpu as pltpu

_LANE = 128                 # lane width: last-dim alignment for dense stores / MXU tiles
_SUBLANE = 8                # f32 sublane tile: second-to-last-dim alignment
_SINGLE_BLOCK_MAX_ROWS = 1024   # up to this many (padded) rows: no-grid VMEM path
_BATCH_TILE = 1024              # rows per grid step on the batch-scaled path


def _round_up(n, m):
    return (n + m - 1) // m * m


def mlp_kernel(x_ref, w1_ref, b1_ref, w2_ref, b2_ref, o_ref):
    # Fused hot path: two MXU matmuls (f32 accumulation) + bias adds + ReLUs (VPU).
    x = x_ref[...]                                                  # [B, D_in]
    h = jnp.dot(x, w1_ref[...], preferred_element_type=jnp.float32)
    h = jnp.maximum(h + b1_ref[...], 0.0)                           # f32 bias + ReLU
    h = h.astype(w2_ref.dtype)                                      # MXU operand dtype
    y = jnp.dot(h, w2_ref[...], preferred_element_type=jnp.float32)
    y = jnp.maximum(y + b2_ref[...], 0.0)
    o_ref[...] = y.astype(o_ref.dtype)


def dummy_network_forward(x, w1, b1, w2, b2, *, compute_dtype=jnp.float32):
    """relu(relu(x @ w1 + b1) @ w2 + b2) — same semantics as DummyNetwork.forward."""
    batch, in_dim = x.shape
    hidden = w1.shape[1]
    out_dim = w2.shape[1]

    # ---- wrapper-side zero-padding for lane/sublane-dense MXU tiles & stores ----
    hid_pad = _round_up(hidden, _LANE)
    out_pad = _round_up(out_dim, _LANE)
    batch_pad = _round_up(batch, _SUBLANE)
    if hid_pad != hidden:
        w1 = jnp.pad(w1, ((0, 0), (0, hid_pad - hidden)))
        b1 = jnp.pad(b1, ((0, 0), (0, hid_pad - hidden)))
        w2 = jnp.pad(w2, ((0, hid_pad - hidden), (0, 0)))
    if out_pad != out_dim:
        w2 = jnp.pad(w2, ((0, 0), (0, out_pad - out_dim)))
        b2 = jnp.pad(b2, ((0, 0), (0, out_pad - out_dim)))
    if batch_pad != batch:
        x = jnp.pad(x, ((0, batch_pad - batch), (0, 0)))

    # Optional bf16 MXU operands for throughput (accumulation stays f32).
    x = x.astype(compute_dtype)
    w1 = w1.astype(compute_dtype)
    w2 = w2.astype(compute_dtype)

    out_shape = jax.ShapeDtypeStruct((batch_pad, out_pad), jnp.float32)

    if batch_pad <= _SINGLE_BLOCK_MAX_ROWS:
        # Tiny / small batch: everything fits in VMEM. No grid, no index_maps,
        # no pipeline overhead — single kernel invocation on whole arrays.
        vmem = pltpu.MemorySpace.VMEM
        out = pl.pallas_call(
            mlp_kernel,
            out_shape=out_shape,
            in_specs=[pl.BlockSpec(memory_space=vmem)] * 5,
            out_specs=pl.BlockSpec(memory_space=vmem),
        )(x, w1, b1, w2, b2)
    else:
        # Batch-scaled path: tile only x and the output along batch; weights &
        # biases keep constant index_maps so they stay VMEM-resident across the
        # grid. "parallel" lets the batch axis shard across TensorCores (v7x).
        tile = _BATCH_TILE
        out = pl.pallas_call(
            mlp_kernel,
            out_shape=out_shape,
            grid=(pl.cdiv(batch_pad, tile),),
            in_specs=[
                pl.BlockSpec((tile, in_dim), lambda i: (i, 0)),
                pl.BlockSpec((in_dim, hid_pad), lambda i: (0, 0)),
                pl.BlockSpec((1, hid_pad), lambda i: (0, 0)),
                pl.BlockSpec((hid_pad, out_pad), lambda i: (0, 0)),
                pl.BlockSpec((1, out_pad), lambda i: (0, 0)),
            ],
            out_specs=pl.BlockSpec((tile, out_pad), lambda i: (i, 0)),
            compiler_params=pltpu.CompilerParams(
                dimension_semantics=("parallel",),
            ),
        )(x, w1, b1, w2, b2)

    return out[:batch, :out_dim]


def init_linear_params(key, in_features, out_features):
    # nn.Linear-style init: U(-1/sqrt(fan_in), 1/sqrt(fan_in)).
    k_w, k_b = jax.random.split(key)
    bound = 1.0 / jnp.sqrt(float(in_features))
    # Stored as [in_features, out_features] (transposed vs PyTorch's [out, in]).
    w = jax.random.uniform(k_w, (in_features, out_features), jnp.float32,
                           minval=-bound, maxval=bound)
    b = jax.random.uniform(k_b, (1, out_features), jnp.float32,
                           minval=-bound, maxval=bound)
    return w, b


def _reference(x, w1, b1, w2, b2):
    return jnp.maximum(jnp.maximum(x @ w1 + b1, 0.0) @ w2 + b2, 0.0)


if __name__ == "__main__":
    input_dim, hidden_dim, output_dim = 32, 64, 8
    batch = 8

    key = jax.random.PRNGKey(0)
    k_x, k_fc1, k_fc2, k_big = jax.random.split(key, 4)

    x = jax.random.normal(k_x, (batch, input_dim), jnp.float32)
    w1, b1 = init_linear_params(k_fc1, input_dim, hidden_dim)
    w2, b2 = init_linear_params(k_fc2, hidden_dim, output_dim)

    forward = jax.jit(dummy_network_forward)  # fuse wrapper pads/slice with the kernel

    # Small-batch (no-grid, whole-array-in-VMEM) path.
    out = jax.block_until_ready(forward(x, w1, b1, w2, b2))
    ref = _reference(x, w1, b1, w2, b2)
    assert out.shape == (batch, output_dim)
    assert jnp.allclose(out, ref, atol=1e-5, rtol=1e-5)

    # Batch-scaled ("parallel" grid, weights VMEM-resident) path.
    big_batch = 4096
    x_big = jax.random.normal(k_big, (big_batch, input_dim), jnp.float32)
    out_big = jax.block_until_ready(forward(x_big, w1, b1, w2, b2))
    ref_big = _reference(x_big, w1, b1, w2, b2)
    assert out_big.shape == (big_batch, output_dim)
    assert jnp.allclose(out_big, ref_big, atol=2e-5, rtol=2e-5)

    print("KERNEL_OK")
</pallas_src>

<mosaic_0001>
module attributes {stable_mosaic.version = 11 : i64} {
  func.func @mlp_kernel(%arg0: memref<8x32xf32, #tpu.memory_space<vmem>>, %arg1: memref<32x128xf32, #tpu.memory_space<vmem>>, %arg2: memref<1x128xf32, #tpu.memory_space<vmem>>, %arg3: memref<128x128xf32, #tpu.memory_space<vmem>>, %arg4: memref<1x128xf32, #tpu.memory_space<vmem>>, %arg5: memref<8x128xf32, #tpu.memory_space<vmem>>) attributes {dimension_semantics = [], scalar_prefetch = 0 : i64, scratch_operands = 0 : i64, tpu.core_type = #tpu.core_type<tc>} {
    %c0 = arith.constant 0 : index
    %c0_0 = arith.constant 0 : index
    %0 = vector.load %arg0[%c0, %c0_0] : memref<8x32xf32, #tpu.memory_space<vmem>>, vector<8x32xf32>
    %c0_1 = arith.constant 0 : index
    %c0_2 = arith.constant 0 : index
    %1 = vector.load %arg1[%c0_1, %c0_2] : memref<32x128xf32, #tpu.memory_space<vmem>>, vector<32x128xf32>
    %cst = arith.constant dense<0.000000e+00> : vector<8x128xf32>
    %2 = tpu.matmul %0, %1, %cst {dimension_numbers = #tpu.dot_dimension_numbers<[1], [0], [0], [1], [0, 0, 1, 1], [], []>} : vector<8x32xf32>, vector<32x128xf32>, vector<8x128xf32> -> vector<8x128xf32>
    %c0_3 = arith.constant 0 : index
    %c0_4 = arith.constant 0 : index
    %3 = vector.load %arg2[%c0_3, %c0_4] : memref<1x128xf32, #tpu.memory_space<vmem>>, vector<1x128xf32>
    %4 = vector.broadcast %3 : vector<1x128xf32> to vector<8x128xf32>
    %5 = arith.addf %2, %4 : vector<8x128xf32>
    %cst_5 = arith.constant 0.000000e+00 : f32
    %6 = vector.broadcast %cst_5 : f32 to vector<8x128xf32>
    %7 = arith.maximumf %5, %6 : vector<8x128xf32>
    %c0_6 = arith.constant 0 : index
    %c0_7 = arith.constant 0 : index
    %8 = vector.load %arg3[%c0_6, %c0_7] : memref<128x128xf32, #tpu.memory_space<vmem>>, vector<128x128xf32>
    %cst_8 = arith.constant dense<0.000000e+00> : vector<8x128xf32>
    %9 = tpu.matmul %7, %8, %cst_8 {dimension_numbers = #tpu.dot_dimension_numbers<[1], [0], [0], [1], [0, 0, 1, 1], [], []>} : vector<8x128xf32>, vector<128x128xf32>, vector<8x128xf32> -> vector<8x128xf32>
    %c0_9 = arith.constant 0 : index
    %c0_10 = arith.constant 0 : index
    %10 = vector.load %arg4[%c0_9, %c0_10] : memref<1x128xf32, #tpu.memory_space<vmem>>, vector<1x128xf32>
    %11 = vector.broadcast %10 : vector<1x128xf32> to vector<8x128xf32>
    %12 = arith.addf %9, %11 : vector<8x128xf32>
    %cst_11 = arith.constant 0.000000e+00 : f32
    %13 = vector.broadcast %cst_11 : f32 to vector<8x128xf32>
    %14 = arith.maximumf %12, %13 : vector<8x128xf32>
    %c0_12 = arith.constant 0 : index
    %c0_13 = arith.constant 0 : index
    %15 = vector.load %arg5[%c0_12, %c0_13] : memref<8x128xf32, #tpu.memory_space<vmem>>, vector<8x128xf32>
    tpu.vector_store %arg5[%c0_12, %c0_13], %14 {strides = array<i32>} : memref<8x128xf32, #tpu.memory_space<vmem>>, vector<8x128xf32>,
    return
  }
}

</mosaic_0001>

<llo_original>
// kernel: dummy_network_forward.1
$region0: #{dummy_network_forward.1}
  #allocation0 [shape = 'u32[]', space=smem, size = 0x4, offset = 0x4, fixed_abs, tag = 'smem constant byte address 0x4 - core index']
  #allocation1 [shape = 'u32[144,128]{1,0:T(1,128)}', space=vmem, size = 0x12000, scoped, tag = 'internal scratch']
  %s0 = inlined_call_operand.vmem [shape: f32[8,32], index: 0, kind: input, shape index: {}]
  %s1 = inlined_call_operand.vmem [shape: f32[32,128], index: 1, kind: input, shape index: {}]
  %s2 = inlined_call_operand.vmem [shape: f32[1,128], index: 2, kind: input, shape index: {}]
  %s3 = inlined_call_operand.vmem [shape: f32[128,128], index: 3, kind: input, shape index: {}]
  %s4 = inlined_call_operand.vmem [shape: f32[1,128], index: 4, kind: input, shape index: {}]
  %s5 = inlined_call_operand.hbm [shape: f32[8,128], index: 5, kind: output, shape index: {}]
  %s6 = sld [smem:[#allocation0]]
  $region30: #{dummy_network_forward.1} parent=0
    _
  %s8 = ssub.s32 1, %s6
  %s9 = scalar_select 0, %s8, %s6
  $region1: #{dummy_network_forward.1} parent=0
    #allocation2 [shape = 'u8[4096]{0}', space=vmem, size = 0x1000, scoped, tag = 'output window, operand 0, single buffered']
    #allocation3 [shape = 's32[1]{0}', space=sflag, size = 0x4, scoped, tag = 'scoped memory for dummy_network_forward.1']
    %10 = vsyncpa [#allocation3], 0
    // Predicated region
    $region2: #{dummy_network_forward.1} parent=1 // pred_check
      _
    $region3: #{dummy_network_forward.1} parent=1 // pred_check_branch
      %12 = sbr.rel (0) target = $region5
    $region4: #{dummy_network_forward.1} parent=1 // pred_region
      _
    $region5: #{dummy_network_forward.1} parent=1 // pred_fallthru
      _
    // Predicated region
    $region6: #{dummy_network_forward.1} parent=1 // pred_check
      _
    $region7: #{dummy_network_forward.1} parent=1 // pred_check_branch
      %14 = sbr.rel (0) target = $region9
    $region8: #{dummy_network_forward.1} parent=1 // pred_region
      _
    $region9: #{dummy_network_forward.1} parent=1 // pred_fallthru
      _
    // Predicated region
    $region10: #{dummy_network_forward.1} parent=1 // pred_check
      _
    $region11: #{dummy_network_forward.1} parent=1 // pred_check_branch
      %16 = sbr.rel (0) target = $region13
    $region12: #{dummy_network_forward.1} parent=1 // pred_region
      _
    $region13: #{dummy_network_forward.1} parent=1 // pred_fallthru
      _
    // Predicated region
    $region14: #{dummy_network_forward.1} parent=1 // pred_check
      _
    $region15: #{dummy_network_forward.1} parent=1 // pred_check_branch
      %18 = sbr.rel (0) target = $region17
    $region16: #{dummy_network_forward.1} parent=1 // pred_region
      _
    $region17: #{dummy_network_forward.1} parent=1 // pred_fallthru
      _
    // Predicated region
    $region18: #{dummy_network_forward.1} parent=1 // pred_check
      _
    $region19: #{dummy_network_forward.1} parent=1 // pred_check_branch
      %20 = sbr.rel (0) target = $region21
    $region20: #{dummy_network_forward.1} parent=1 // pred_region
      _
    $region21: #{dummy_network_forward.1} parent=1 // pred_fallthru
      _
    %v21 = vld [vmem:[%s0] sm:$0xff]
    %v22 = vld [vmem:[%s1] sm:$0xff]
    %v23 = vld [vmem:[%s1 + $0x8] sm:$0xff]
    %v24 = vld [vmem:[%s1 + $0x10] sm:$0xff]
    %v25 = vld [vmem:[%s1 + $0x18] sm:$0xff]
    %v26 = vld [vmem:[%s2] sm:$0x1]
    %v28 = vlaneseq
    %v29 = vshrl.u32 %v28, 7
    %v30 = vsub.s32 0, %v29
    %v31 = vrot.slane %v26, %v30
    %vm33 = vcmask 261120
    %v35 = vsel %vm33, %v21, 0
    %37 = vmatprep.subr.mxu0 0.0
    %38 = vmatpush1.msra.mxu0 %v22
    %39 = vmatprep.subr.mxu0 0.0
    %40 = vmatpush1.msra.mxu0 %v23
    %41 = vmatprep.subr.mxu0 0.0
    %42 = vmatpush1.msra.mxu0 %v24
    %43 = vmatprep.subr.mxu0 0.0
    %44 = vmatpush1.msra.mxu0 %v25
    %45 = vmatprep.subr.mxu0 0.0
    %46 = vmatpush1.msra.mxu0 0.0
    %47 = vmatprep.subr.mxu0 0.0
    %48 = vmatpush1.msra.mxu0 0.0
    %49 = vmatprep.subr.mxu0 0.0
    %50 = vmatpush1.msra.mxu0 0.0
    %51 = vmatprep.subr.mxu0 0.0
    %52 = vmatpush1.msra.mxu0 0.0
    %53 = vmatprep.subr.mxu0 0.0
    %54 = vmatpush1.msra.mxu0 0.0
    %55 = vmatprep.subr.mxu0 0.0
    %56 = vmatpush1.msra.mxu0 0.0
    %57 = vmatprep.subr.mxu0 0.0
    %58 = vmatpush1.msra.mxu0 0.0
    %59 = vmatprep.subr.mxu0 0.0
    %60 = vmatpush1.msra.mxu0 0.0
    %61 = vmatprep.subr.mxu0 0.0
    %62 = vmatpush1.msra.mxu0 0.0
    %63 = vmatprep.subr.mxu0 0.0
    %64 = vmatpush1.msra.mxu0 0.0
    %65 = vmatprep.subr.mxu0 0.0
    %66 = vmatpush1.msra.mxu0 0.0
    %67 = vmatprep.subr.mxu0 0.0
    %68 = vmatpush1.msra.mxu0 0.0
    %69 = vmatprep.subr.mxu0 0.0
    %70 = vmatpush1.msra.mxu0 0.0
    %71 = vmatprep.subr.mxu0 0.0
    %72 = vmatpush1.msra.mxu0 0.0
    %73 = vmatprep.subr.mxu0 0.0
    %74 = vmatpush1.msra.mxu0 0.0
    %75 = vmatprep.subr.mxu0 0.0
    %76 = vmatpush1.msra.mxu0 0.0
    %77 = vmatprep.subr.mxu0 0.0
    %78 = vmatpush1.msra.mxu0 0.0
    %79 = vmatprep.subr.mxu0 0.0
    %80 = vmatpush1.msra.mxu0 0.0
    %81 = vmatprep.subr.mxu0 0.0
    %82 = vmatpush1.msra.mxu0 0.0
    %83 = vmatprep.subr.mxu0 0.0
    %84 = vmatpush1.msra.mxu0 0.0
    %85 = vmatprep.subr.mxu0 0.0
    %86 = vmatpush1.msra.mxu0 0.0
    %87 = vmatprep.subr.mxu0 0.0
    %88 = vmatpush1.msra.mxu0 0.0
    %89 = vmatprep.subr.mxu0 0.0
    %90 = vmatpush1.msra.mxu0 0.0
    %91 = vmatprep.subr.mxu0 0.0
    %92 = vmatpush1.msra.mxu0 0.0
    %93 = vmatprep.subr.mxu0 0.0
    %94 = vmatpush1.msra.mxu0 0.0
    %95 = vmatprep.subr.mxu0 0.0
    %96 = vmatpush1.msra.mxu0 0.0
    %97 = vmatprep.subr.mxu0 0.0
    %98 = vmatpush1.msra.mxu0 0.0
    %99 = vmatprep.subr.mxu0 0.0
    %100 = vmatpush1.msra.mxu0 0.0
    %101 = vmatprep.mubr.f32.mxu0 0.0
    %102 = vmatmul.mubr.f32.gmra.mrb[0].mxu0 %v35
    %v103 = vpop.f32.mrb[0].mxu0
    %v104 = vadd.f32 %v31, %v103
    %v105 = vpop.f32.mrb[0].mxu0
    %106 = vdwg.mxu0
    %v107 = vmax.f32 %v104, 0.0
    %v108 = vld [vmem:[%s3] sm:$0xff]
    %v109 = vld [vmem:[%s3 + $0x8] sm:$0xff]
    %v110 = vld [vmem:[%s3 + $0x10] sm:$0xff]
    %v111 = vld [vmem:[%s3 + $0x18] sm:$0xff]
    %v112 = vld [vmem:[%s3 + $0x20] sm:$0xff]
    %v113 = vld [vmem:[%s3 + $0x28] sm:$0xff]
    %v114 = vld [vmem:[%s3 + $0x30] sm:$0xff]
    %v115 = vld [vmem:[%s3 + $0x38] sm:$0xff]
    %v116 = vld [vmem:[%s3 + $0x40] sm:$0xff]
    %v117 = vld [vmem:[%s3 + $0x48] sm:$0xff]
    %v118 = vld [vmem:[%s3 + $0x50] sm:$0xff]
    %v119 = vld [vmem:[%s3 + $0x58] sm:$0xff]
    %v120 = vld [vmem:[%s3 + $0x60] sm:$0xff]
    %v121 = vld [vmem:[%s3 + $0x68] sm:$0xff]
    %v122 = vld [vmem:[%s3 + $0x70] sm:$0xff]
    %v123 = vld [vmem:[%s3 + $0x78] sm:$0xff]
    %v124 = vld [vmem:[%s4] sm:$0x1]
    %v126 = vlaneseq
    %v127 = vshrl.u32 %v126, 7
    %v128 = vsub.s32 0, %v127
    %v129 = vrot.slane %v124, %v128
    %131 = vmatprep.subr.mxu0 0.0
    %132 = vmatpush1.msra.mxu0 %v108
    %133 = vmatprep.subr.mxu0 0.0
    %134 = vmatpush1.msra.mxu0 %v109
    %135 = vmatprep.subr.mxu0 0.0
    %136 = vmatpush1.msra.mxu0 %v110
    %137 = vmatprep.subr.mxu0 0.0
    %138 = vmatpush1.msra.mxu0 %v111
    %139 = vmatprep.subr.mxu0 0.0
    %140 = vmatpush1.msra.mxu0 %v112
    %141 = vmatprep.subr.mxu0 0.0
    %142 = vmatpush1.msra.mxu0 %v113
    %143 = vmatprep.subr.mxu0 0.0
    %144 = vmatpush1.msra.mxu0 %v114
    %145 = vmatprep.subr.mxu0 0.0
    %146 = vmatpush1.msra.mxu0 %v115
    %147 = vmatprep.subr.mxu0 0.0
    %148 = vmatpush1.msra.mxu0 %v116
    %149 = vmatprep.subr.mxu0 0.0
    %150 = vmatpush1.msra.mxu0 %v117
    %151 = vmatprep.subr.mxu0 0.0
    %152 = vmatpush1.msra.mxu0 %v118
    %153 = vmatprep.subr.mxu0 0.0
    %154 = vmatpush1.msra.mxu0 %v119
    %155 = vmatprep.subr.mxu0 0.0
    %156 = vmatpush1.msra.mxu0 %v120
    %157 = vmatprep.subr.mxu0 0.0
    %158 = vmatpush1.msra.mxu0 %v121
    %159 = vmatprep.subr.mxu0 0.0
    %160 = vmatpush1.msra.mxu0 %v122
    %161 = vmatprep.subr.mxu0 0.0
    %162 = vmatpush1.msra.mxu0 %v123
    %163 = vmatprep.subr.mxu0 0.0
    %164 = vmatpush1.msra.mxu0 0.0
    %165 = vmatprep.subr.mxu0 0.0
    %166 = vmatpush1.msra.mxu0 0.0
    %167 = vmatprep.subr.mxu0 0.0
    %168 = vmatpush1.msra.mxu0 0.0
    %169 = vmatprep.subr.mxu0 0.0
    %170 = vmatpush1.msra.mxu0 0.0
    %171 = vmatprep.subr.mxu0 0.0
    %172 = vmatpush1.msra.mxu0 0.0
    %173 = vmatprep.subr.mxu0 0.0
    %174 = vmatpush1.msra.mxu0 0.0
    %175 = vmatprep.subr.mxu0 0.0
    %176 = vmatpush1.msra.mxu0 0.0
    %177 = vmatprep.subr.mxu0 0.0
    %178 = vmatpush1.msra.mxu0 0.0
    %179 = vmatprep.subr.mxu0 0.0
    %180 = vmatpush1.msra.mxu0 0.0
    %181 = vmatprep.subr.mxu0 0.0
    %182 = vmatpush1.msra.mxu0 0.0
    %183 = vmatprep.subr.mxu0 0.0
    %184 = vmatpush1.msra.mxu0 0.0
    %185 = vmatprep.subr.mxu0 0.0
    %186 = vmatpush1.msra.mxu0 0.0
    %187 = vmatprep.subr.mxu0 0.0
    %188 = vmatpush1.msra.mxu0 0.0
    %189 = vmatprep.subr.mxu0 0.0
    %190 = vmatpush1.msra.mxu0 0.0
    %191 = vmatprep.subr.mxu0 0.0
    %192 = vmatpush1.msra.mxu0 0.0
    %193 = vmatprep.subr.mxu0 0.0
    %194 = vmatpush1.msra.mxu0 0.0
    %195 = vmatprep.mubr.f32.mxu0 0.0
    %196 = vmatmul.mubr.f32.gmra.mrb[0].mxu0 %v107
    %v197 = vpop.f32.mrb[0].mxu0
    %v198 = vadd.f32 %v129, %v197
    %v199 = vpop.f32.mrb[0].mxu0
    %200 = vdwg.mxu0
    %v201 = vmax.f32 %v198, 0.0
    %202 = vst [vmem:[#allocation2] sm:$0xff] %v201
    // Predicated region
    $region22: #{dummy_network_forward.1} parent=1 // pred_check
      _
    $region23: #{dummy_network_forward.1} parent=1 // pred_check_branch
      %204 = sbr.rel (0) target = $region25
    $region24: #{dummy_network_forward.1} parent=1 // pred_region
      %s206 = ssub.s32 128, 128
      %207 = vsyncadd [#allocation3], %s206
      %s209 = sshll.u32 [#allocation2], 4
      %s210 = int_to_ptr.vmem [resolvable:$true] %s209
      %212 = dma.vmem_to_hbm [thread:$0]  %s210, 128, %s5, [#allocation3]
    $region25: #{dummy_network_forward.1} parent=1 // pred_fallthru
      _
    // Predicated region
    $region26: #{dummy_network_forward.1} parent=1 // pred_check
      _
    $region27: #{dummy_network_forward.1} parent=1 // pred_check_branch
      %214 = sbr.rel (0) target = $region29
    $region28: #{dummy_network_forward.1} parent=1 // pred_region
      %215 = dma.done [#allocation3], 128
    $region29: #{dummy_network_forward.1} parent=1 // pred_fallthru
      _
    %216 = vsyncpa [#allocation3], 1

</llo_original>
